<compile_context>
chip_gen: v7x
topology: tpu7x:2x2x1
jax: 0.10.0
libtpu: 0.0.40
codegen_flags: <defaults>
</compile_context>

<pallas_src>
import functools

import jax
import jax.numpy as jnp
from jax.experimental import pallas as pl
from jax.experimental.pallas import tpu as pltpu

LANE = 128  # lane width / channel padding target


def _round_up(x, m):
    return (x + m - 1) // m * m


def _choose_tiles(n_pad, tm_req=512, tk_req=512):
    """Pick (tm, tk): multiples of 128 that divide n_pad; >=2 row tiles if possible."""
    m = n_pad // LANE  # number of 128-row blocks

    def pick(req_blocks):
        req_blocks = max(1, min(req_blocks, m))
        for d in range(req_blocks, 0, -1):
            if m % d == 0:
                return d * LANE
        return LANE

    tm_blocks = max(1, tm_req // LANE)
    if m >= 2:
        # v7x megacore: keep at least 2 tiles on the "parallel" row axis.
        tm_blocks = min(tm_blocks, max(1, m // 2))
    tm = pick(tm_blocks)
    tk = pick(max(1, tk_req // LANE))
    return tm, tk


# ----------------------------------------------------------------------------
# Layer 1 (fused):  XW2 = relu(A_hat @ (X @ W1) + b1) @ W2
#   grid = (N/tm rows "parallel", N/tk reduction "arbitrary")
#   W1, b1, W2 are VMEM-resident (constant-index BlockSpecs, DMA'd once).
# ----------------------------------------------------------------------------
def _layer1_kernel(a_ref, x_ref, w1_ref, b1_ref, w2_ref, o_ref, acc_ref):
    k = pl.program_id(1)

    @pl.when(k == 0)
    def _():
        acc_ref[...] = jnp.zeros_like(acc_ref)

    # Fused feature transform + aggregation: acc += A_tile @ (X_tile @ W1).
    xw = jnp.dot(x_ref[...], w1_ref[...], preferred_element_type=jnp.float32)
    acc_ref[...] += jnp.dot(
        a_ref[...], xw.astype(jnp.bfloat16), preferred_element_type=jnp.float32
    )

    # Finalize once per output tile: bias + relu, then fold in W2 of layer 2.
    @pl.when(k == pl.num_programs(1) - 1)
    def _():
        h = jnp.maximum(acc_ref[...] + b1_ref[...], 0.0)
        o_ref[...] = jnp.dot(
            h.astype(jnp.bfloat16), w2_ref[...], preferred_element_type=jnp.float32
        ).astype(o_ref.dtype)


def gcn_layer1(a_hat, x_pad, w1, b1, w2, *, tm, tk, vmem_limit):
    n = a_hat.shape[0]
    c_in = x_pad.shape[1]
    c_hid = w1.shape[1]
    c_out = w2.shape[1]
    assert n % tm == 0 and n % tk == 0

    return pl.pallas_call(
        _layer1_kernel,
        out_shape=jax.ShapeDtypeStruct((n, c_out), jnp.bfloat16),
        grid_spec=pltpu.PrefetchScalarGridSpec(
            num_scalar_prefetch=0,
            grid=(n // tm, n // tk),  # reduction axis last
            in_specs=[
                pl.BlockSpec((tm, tk), lambda i, k: (i, k)),      # A_hat tile (stream)
                pl.BlockSpec((tk, c_in), lambda i, k: (k, 0)),    # X tile (stream)
                pl.BlockSpec((c_in, c_hid), lambda i, k: (0, 0)), # W1 (resident)
                pl.BlockSpec((1, c_hid), lambda i, k: (0, 0)),    # b1 (resident)
                pl.BlockSpec((c_hid, c_out), lambda i, k: (0, 0)),# W2 (resident)
            ],
            out_specs=pl.BlockSpec((tm, c_out), lambda i, k: (i, 0)),
            scratch_shapes=[pltpu.VMEM((tm, c_hid), jnp.float32)],
        ),
        compiler_params=pltpu.CompilerParams(
            dimension_semantics=("parallel", "arbitrary"),
            vmem_limit_bytes=vmem_limit,
        ),
        cost_estimate=pl.CostEstimate(
            flops=2 * n * n * c_hid
            + 2 * (n // tm) * n * c_in * c_hid
            + 2 * n * c_hid * c_out,
            transcendentals=0,
            bytes_accessed=n * n * a_hat.dtype.itemsize
            + (n // tm) * n * c_in * x_pad.dtype.itemsize
            + n * c_out * 2,
        ),
    )(a_hat, x_pad, w1, b1, w2)


# ----------------------------------------------------------------------------
# Layer 2:  out = A_hat @ XW2 + b2
# ----------------------------------------------------------------------------
def _layer2_kernel(a_ref, xw_ref, b_ref, o_ref, acc_ref):
    k = pl.program_id(1)

    @pl.when(k == 0)
    def _():
        acc_ref[...] = jnp.zeros_like(acc_ref)

    acc_ref[...] += jnp.dot(
        a_ref[...], xw_ref[...], preferred_element_type=jnp.float32
    )

    @pl.when(k == pl.num_programs(1) - 1)
    def _():
        o_ref[...] = (acc_ref[...] + b_ref[...]).astype(o_ref.dtype)


def gcn_layer2(a_hat, xw2, b2, *, tm, tk, vmem_limit):
    n = a_hat.shape[0]
    c_out = xw2.shape[1]
    assert n % tm == 0 and n % tk == 0

    return pl.pallas_call(
        _layer2_kernel,
        # bf16 output halves the padded writeback; upcast after slicing.
        out_shape=jax.ShapeDtypeStruct((n, c_out), jnp.bfloat16),
        grid_spec=pltpu.PrefetchScalarGridSpec(
            num_scalar_prefetch=0,
            grid=(n // tm, n // tk),
            in_specs=[
                pl.BlockSpec((tm, tk), lambda i, k: (i, k)),    # A_hat tile
                pl.BlockSpec((tk, c_out), lambda i, k: (k, 0)), # XW2 tile
                pl.BlockSpec((1, c_out), lambda i, k: (0, 0)),  # b2 (resident)
            ],
            out_specs=pl.BlockSpec((tm, c_out), lambda i, k: (i, 0)),
            scratch_shapes=[pltpu.VMEM((tm, c_out), jnp.float32)],
        ),
        compiler_params=pltpu.CompilerParams(
            dimension_semantics=("parallel", "arbitrary"),
            vmem_limit_bytes=vmem_limit,
        ),
        cost_estimate=pl.CostEstimate(
            flops=2 * n * n * c_out,
            transcendentals=0,
            bytes_accessed=n * n * a_hat.dtype.itemsize
            + (n // tm) * n * c_out * xw2.dtype.itemsize
            + n * c_out * 2,
        ),
    )(a_hat, xw2, b2)


# ----------------------------------------------------------------------------
# Symmetric-normalized dense adjacency (PyG gcn_norm / add_remaining_self_loops
# semantics), zero-padded to n_pad, bf16.  Precompute + cache per graph.
# ----------------------------------------------------------------------------
def build_normalized_adjacency(edge_index, edge_weight, num_nodes, num_nodes_pad):
    src = edge_index[0]  # message sources
    dst = edge_index[1]  # message destinations (source_to_target flow)
    if edge_weight is None:
        edge_weight = jnp.ones(src.shape[0], dtype=jnp.float32)
    edge_weight = edge_weight.astype(jnp.float32)

    a = jnp.zeros((num_nodes, num_nodes), jnp.float32).at[dst, src].add(edge_weight)
    # add_remaining_self_loops: keep explicit self-loop weights; add weight-1
    # self-loops only for nodes that do not already have one.
    has_self = jnp.zeros((num_nodes,), jnp.float32).at[dst].add(
        jnp.where(src == dst, 1.0, 0.0)
    )
    a = a + jnp.diag(jnp.where(has_self > 0, 0.0, 1.0))

    deg = jnp.sum(a, axis=1)
    d_inv_sqrt = jnp.where(deg > 0, jax.lax.rsqrt(deg), 0.0)
    a_hat = d_inv_sqrt[:, None] * a * d_inv_sqrt[None, :]

    pad = num_nodes_pad - num_nodes
    a_hat = jnp.pad(a_hat, ((0, pad), (0, pad)))  # zero rows/cols are inert
    return a_hat.astype(jnp.bfloat16)


# ----------------------------------------------------------------------------
# Params: glorot weights (PyG default), zero bias; zero-padded to lane width.
# ----------------------------------------------------------------------------
def init_gcn_params(key, in_channels, hidden_channels, out_channels):
    k1, k2 = jax.random.split(key)

    def glorot(k, fan_in, fan_out):
        limit = jnp.sqrt(6.0 / (fan_in + fan_out))
        return jax.random.uniform(
            k, (fan_in, fan_out), jnp.float32, minval=-limit, maxval=limit
        )

    c_in_pad = _round_up(in_channels, LANE)
    hid_pad = _round_up(hidden_channels, LANE)
    out_pad = _round_up(out_channels, LANE)

    w1 = jnp.zeros((c_in_pad, hid_pad), jnp.float32)
    w1 = w1.at[:in_channels, :hidden_channels].set(
        glorot(k1, in_channels, hidden_channels))
    w2 = jnp.zeros((hid_pad, out_pad), jnp.float32)
    w2 = w2.at[:hidden_channels, :out_channels].set(
        glorot(k2, hidden_channels, out_channels))

    return {
        "w1": w1.astype(jnp.bfloat16),
        "b1": jnp.zeros((1, hid_pad), jnp.float32),
        "w2": w2.astype(jnp.bfloat16),
        "b2": jnp.zeros((1, out_pad), jnp.float32),
        "in_channels": in_channels,
        "hidden_channels": hidden_channels,
        "out_channels": out_channels,
    }


# ----------------------------------------------------------------------------
# Full model forward
# ----------------------------------------------------------------------------
def gcn_forward(params, x, edge_index, edge_weight=None, *,
                a_hat=None, tile_rows=512, tile_k=512):
    num_nodes, in_channels = x.shape
    c_in_pad = params["w1"].shape[0]
    hid_pad = params["w1"].shape[1]
    out_pad = params["w2"].shape[1]

    n_pad = _round_up(num_nodes, LANE)
    tm, tk = _choose_tiles(n_pad, tile_rows, tile_k)

    if a_hat is None:
        # Prefer precomputing/caching this per graph (dense XLA scatter + norm).
        a_hat = build_normalized_adjacency(edge_index, edge_weight, num_nodes, n_pad)

    x_pad = jnp.pad(
        x, ((0, n_pad - num_nodes), (0, c_in_pad - in_channels))
    ).astype(jnp.bfloat16)

    # VMEM budget: streamed A + X tiles (double-buffered), resident weights,
    # f32 accumulator, double-buffered bf16 output.
    vmem_needed = (
        2 * (tm * tk * 2 + tk * c_in_pad * 2)
        + 2 * (c_in_pad * hid_pad * 2 + hid_pad * out_pad * 2 + hid_pad * 4 + out_pad * 4)
        + tm * hid_pad * 4 + tm * out_pad * 4
        + 2 * tm * out_pad * 2
        + 2 * tk * out_pad * 2
    )
    vmem_limit = int(min(48 * 2**20, max(2 * vmem_needed, 16 * 2**20)))

    # Layer 1 (fused X@W1 and H1@W2) -> XW2; layer 2 aggregates XW2.
    xw2 = gcn_layer1(a_hat, x_pad, params["w1"], params["b1"], params["w2"],
                     tm=tm, tk=tk, vmem_limit=vmem_limit)
    # TODO(synk): training-mode dropout (pltpu.prng_random_bits mask on H1) not
    # needed for the inference-equivalent forward (F.dropout, training=False).
    out = gcn_layer2(a_hat, xw2, params["b2"], tm=tm, tk=tk, vmem_limit=vmem_limit)

    # Slice away node/channel padding; upcast the bf16 writeback to f32 logits.
    return out[:num_nodes, : params["out_channels"]].astype(jnp.float32)


if __name__ == "__main__":
    # Small synthetic graph consistent with the module's forward signature.
    num_nodes = 200          # padded to 256 -> (2, 1) aggregation grid
    in_channels = 16
    hidden_channels = 32
    out_channels = 8
    num_edges = 512
    dropout = 0.5            # unused in eval mode

    key = jax.random.PRNGKey(0)
    k_x, k_e, k_w, k_p = jax.random.split(key, 4)

    x = jax.random.normal(k_x, (num_nodes, in_channels), jnp.float32)
    edge_index = jax.random.randint(k_e, (2, num_edges), 0, num_nodes, jnp.int32)
    edge_weight = jax.random.uniform(k_w, (num_edges,), jnp.float32)

    params = init_gcn_params(k_p, in_channels, hidden_channels, out_channels)

    logits = gcn_forward(params, x, edge_index, edge_weight)
    jax.block_until_ready(logits)

    assert logits.shape == (num_nodes, out_channels)
    assert logits.dtype == jnp.float32
    assert bool(jnp.all(jnp.isfinite(logits)))
    print("KERNEL_OK")
</pallas_src>

<mosaic_0001>
module attributes {stable_mosaic.version = 11 : i64} {
  func.func @_layer1_kernel(%arg0: i32, %arg1: i32, %arg2: memref<128x256xbf16, #tpu.memory_space<vmem>>, %arg3: memref<256x128xbf16, #tpu.memory_space<vmem>>, %arg4: memref<128x128xbf16, #tpu.memory_space<vmem>>, %arg5: memref<1x128xf32, #tpu.memory_space<vmem>>, %arg6: memref<128x128xbf16, #tpu.memory_space<vmem>>, %arg7: memref<128x128xbf16, #tpu.memory_space<vmem>>, %arg8: memref<128x128xf32, #tpu.memory_space<vmem>>) attributes {dimension_semantics = [#tpu.dimension_semantics<parallel>, #tpu.dimension_semantics<arbitrary>], iteration_bounds = array<i64: 2, 1>, scalar_prefetch = 0 : i64, scratch_operands = 1 : i64, tpu.core_type = #tpu.core_type<tc>, window_params = [{transform_indices = @transform_0, window_bounds = array<i64: 128, 256>}, {transform_indices = @transform_1, window_bounds = array<i64: 256, 128>}, {pipeline_mode = #tpu.pipeline_mode<synchronous>, transform_indices = @transform_2, window_bounds = array<i64: 128, 128>}, {pipeline_mode = #tpu.pipeline_mode<synchronous>, transform_indices = @transform_3, window_bounds = array<i64: 1, 128>}, {pipeline_mode = #tpu.pipeline_mode<synchronous>, transform_indices = @transform_4, window_bounds = array<i64: 128, 128>}, {transform_indices = @transform_5, window_bounds = array<i64: 128, 128>}]} {
    %c0_i32 = arith.constant 0 : i32
    %0 = arith.cmpi eq, %arg1, %c0_i32 : i32
    %1 = arith.extui %0 : i1 to i32
    %c0_i32_0 = arith.constant 0 : i32
    %2 = arith.cmpi ne, %1, %c0_i32_0 : i32
    scf.if %2 {
      %cst_13 = arith.constant 0.000000e+00 : f32
      %15 = vector.broadcast %cst_13 : f32 to vector<128x128xf32>
      %c0_14 = arith.constant 0 : index
      %c0_15 = arith.constant 0 : index
      %16 = vector.load %arg8[%c0_14, %c0_15] : memref<128x128xf32, #tpu.memory_space<vmem>>, vector<128x128xf32>
      tpu.vector_store %arg8[%c0_14, %c0_15], %15 {strides = array<i32>} : memref<128x128xf32, #tpu.memory_space<vmem>>, vector<128x128xf32>,
    } else {
    }
    %c0 = arith.constant 0 : index
    %c0_1 = arith.constant 0 : index
    %3 = vector.load %arg3[%c0, %c0_1] : memref<256x128xbf16, #tpu.memory_space<vmem>>, vector<256x128xbf16>
    %c0_2 = arith.constant 0 : index
    %c0_3 = arith.constant 0 : index
    %4 = vector.load %arg4[%c0_2, %c0_3] : memref<128x128xbf16, #tpu.memory_space<vmem>>, vector<128x128xbf16>
    %cst = arith.constant dense<0.000000e+00> : vector<256x128xf32>
    %5 = tpu.matmul %3, %4, %cst {dimension_numbers = #tpu.dot_dimension_numbers<[1], [0], [0], [1], [0, 0, 1, 1], [], []>} : vector<256x128xbf16>, vector<128x128xbf16>, vector<256x128xf32> -> vector<256x128xf32>
    %c0_4 = arith.constant 0 : index
    %c0_5 = arith.constant 0 : index
    %6 = vector.load %arg8[%c0_4, %c0_5] : memref<128x128xf32, #tpu.memory_space<vmem>>, vector<128x128xf32>
    %c0_6 = arith.constant 0 : index
    %c0_7 = arith.constant 0 : index
    %7 = vector.load %arg2[%c0_6, %c0_7] : memref<128x256xbf16, #tpu.memory_space<vmem>>, vector<128x256xbf16>
    %8 = arith.truncf %5 : vector<256x128xf32> to vector<256x128xbf16>
    %cst_8 = arith.constant dense<0.000000e+00> : vector<128x128xf32>
    %9 = tpu.matmul %7, %8, %cst_8 {dimension_numbers = #tpu.dot_dimension_numbers<[1], [0], [0], [1], [0, 0, 1, 1], [], []>} : vector<128x256xbf16>, vector<256x128xbf16>, vector<128x128xf32> -> vector<128x128xf32>
    %10 = arith.addf %6, %9 : vector<128x128xf32>
    %c0_9 = arith.constant 0 : index
    %c0_10 = arith.constant 0 : index
    %11 = vector.load %arg8[%c0_9, %c0_10] : memref<128x128xf32, #tpu.memory_space<vmem>>, vector<128x128xf32>
    tpu.vector_store %arg8[%c0_9, %c0_10], %10 {strides = array<i32>} : memref<128x128xf32, #tpu.memory_space<vmem>>, vector<128x128xf32>,
    %c0_i32_11 = arith.constant 0 : i32
    %12 = arith.cmpi eq, %arg1, %c0_i32_11 : i32
    %13 = arith.extui %12 : i1 to i32
    %c0_i32_12 = arith.constant 0 : i32
    %14 = arith.cmpi ne, %13, %c0_i32_12 : i32
    scf.if %14 {
      %c0_13 = arith.constant 0 : index
      %c0_14 = arith.constant 0 : index
      %15 = vector.load %arg8[%c0_13, %c0_14] : memref<128x128xf32, #tpu.memory_space<vmem>>, vector<128x128xf32>
      %c0_15 = arith.constant 0 : index
      %c0_16 = arith.constant 0 : index
      %16 = vector.load %arg5[%c0_15, %c0_16] : memref<1x128xf32, #tpu.memory_space<vmem>>, vector<1x128xf32>
      %17 = vector.broadcast %16 : vector<1x128xf32> to vector<128x128xf32>
      %18 = arith.addf %15, %17 : vector<128x128xf32>
      %cst_17 = arith.constant 0.000000e+00 : f32
      %19 = vector.broadcast %cst_17 : f32 to vector<128x128xf32>
      %20 = arith.maximumf %18, %19 : vector<128x128xf32>
      %21 = arith.truncf %20 : vector<128x128xf32> to vector<128x128xbf16>
      %c0_18 = arith.constant 0 : index
      %c0_19 = arith.constant 0 : index
      %22 = vector.load %arg6[%c0_18, %c0_19] : memref<128x128xbf16, #tpu.memory_space<vmem>>, vector<128x128xbf16>
      %cst_20 = arith.constant dense<0.000000e+00> : vector<128x128xf32>
      %23 = tpu.matmul %21, %22, %cst_20 {dimension_numbers = #tpu.dot_dimension_numbers<[1], [0], [0], [1], [0, 0, 1, 1], [], []>} : vector<128x128xbf16>, vector<128x128xbf16>, vector<128x128xf32> -> vector<128x128xf32>
      %24 = arith.truncf %23 : vector<128x128xf32> to vector<128x128xbf16>
      %c0_21 = arith.constant 0 : index
      %c0_22 = arith.constant 0 : index
      %25 = vector.load %arg7[%c0_21, %c0_22] : memref<128x128xbf16, #tpu.memory_space<vmem>>, vector<128x128xbf16>
      tpu.vector_store %arg7[%c0_21, %c0_22], %24 {strides = array<i32>} : memref<128x128xbf16, #tpu.memory_space<vmem>>, vector<128x128xbf16>,
    } else {
    }
    return
  }
  func.func @transform_0(%arg0: i32, %arg1: i32) -> (i32, i32) {
    %c0_i32 = arith.constant 0 : i32
    return %arg0, %arg1 : i32, i32
  }
  func.func @transform_1(%arg0: i32, %arg1: i32) -> (i32, i32) {
    %c0_i32 = arith.constant 0 : i32
    %c0_i32_0 = arith.constant 0 : i32
    return %arg1, %c0_i32 : i32, i32
  }
  func.func @transform_2(%arg0: i32, %arg1: i32) -> (i32, i32) {
    %c0_i32 = arith.constant 0 : i32
    %c0_i32_0 = arith.constant 0 : i32
    %c0_i32_1 = arith.constant 0 : i32
    return %c0_i32, %c0_i32_0 : i32, i32
  }
  func.func @transform_3(%arg0: i32, %arg1: i32) -> (i32, i32) {
    %c0_i32 = arith.constant 0 : i32
    %c0_i32_0 = arith.constant 0 : i32
    %c0_i32_1 = arith.constant 0 : i32
    return %c0_i32, %c0_i32_0 : i32, i32
  }
  func.func @transform_4(%arg0: i32, %arg1: i32) -> (i32, i32) {
    %c0_i32 = arith.constant 0 : i32
    %c0_i32_0 = arith.constant 0 : i32
    %c0_i32_1 = arith.constant 0 : i32
    return %c0_i32, %c0_i32_0 : i32, i32
  }
  func.func @transform_5(%arg0: i32, %arg1: i32) -> (i32, i32) {
    %c0_i32 = arith.constant 0 : i32
    %c0_i32_0 = arith.constant 0 : i32
    return %arg0, %c0_i32 : i32, i32
  }
}

</mosaic_0001>

<llo_original>
// kernel: tpu_custom_call.1
$region0: #{tpu_custom_call.1}
  #allocation0 [shape = 'u32[]', space=smem, size = 0x4, offset = 0x4, fixed_abs, tag = 'smem constant byte address 0x4 - core index']
  #allocation1 [shape = 'u32[144,128]{1,0:T(1,128)}', space=vmem, size = 0x12000, scoped, tag = 'internal scratch']
  #allocation2 [shape = 'f32[128,128]{1,0:T(8,128)}', space=vmem, size = 0x10000, scoped, tag = 'scratch operand']
  %s0 = inlined_call_operand.hbm [shape: bf16[256,256], index: 0, kind: input, shape index: {}]
  %s1 = inlined_call_operand.hbm [shape: bf16[256,128], index: 1, kind: input, shape index: {}]
  %s2 = inlined_call_operand.hbm [shape: bf16[128,128], index: 2, kind: input, shape index: {}]
  %s3 = inlined_call_operand.vmem [shape: f32[1,128], index: 3, kind: input, shape index: {}]
  %s4 = inlined_call_operand.hbm [shape: bf16[128,128], index: 4, kind: input, shape index: {}]
  %s5 = inlined_call_operand.hbm [shape: bf16[256,128], index: 5, kind: output, shape index: {}]
  %s6 = sld [smem:[#allocation0]]
  $region77: #{tpu_custom_call.1} parent=0
    _
  %s8 = ssub.s32 1, %s6
  %s9 = scalar_select 0, %s8, %s6
  $region1: #{tpu_custom_call.1} parent=0
    #allocation3 [shape = 'u8[131072]{0}', space=vmem, size = 0x20000, scoped, tag = 'input window, operand 0']
    #allocation4 [shape = 's32[2]{0}', space=sflag, size = 0x8, scoped, tag = 'scoped memory for tpu_custom_call.1']
    #allocation5 [shape = 's32[2]{0}', space=sflag, size = 0x8, scoped, tag = 'scoped memory for tpu_custom_call.1']
    #allocation6 [shape = 'u8[65536]{0}', space=vmem, size = 0x10000, scoped, tag = 'input window, operand 1, single buffered']
    #allocation7 [shape = 's32[1]{0}', space=sflag, size = 0x4, scoped, tag = 'scoped memory for tpu_custom_call.1']
    #allocation8 [shape = 'u8[32768]{0}', space=vmem, size = 0x8000, scoped, tag = 'input window, operand 2, single buffered']
    #allocation9 [shape = 'u8[32768]{0}', space=vmem, size = 0x8000, scoped, tag = 'input window, operand 4, single buffered']
    #allocation10 [shape = 's32[1]{0}', space=sflag, size = 0x4, scoped, tag = 'scoped memory for tpu_custom_call.1']
    #allocation11 [shape = 'u8[65536]{0}', space=vmem, size = 0x10000, scoped, tag = 'output window, operand 0']
    %10 = vsyncpa [#allocation4], 0
    %s11 = scalar_lea.sflag [#allocation4], 1
    %12 = vsyncpa %s11, 0
    %13 = vsyncpa [#allocation7], 0
    %14 = vsyncpa [#allocation10], 0
    %15 = vsyncpa [#allocation5], 0
    %s16 = scalar_lea.sflag [#allocation5], 1
    %17 = vsyncpa %s16, 0
    loop: start=0, step=1, limit=4
    $region2: #{tpu_custom_call.1} parent=1 // loop_pre_header
      _
    $region3: #{tpu_custom_call.1} parent=1 // loop_header
      %s19 = sphi 0, %s23
      %p20 = scmp.ge.s32.totalorder %s19, 4
      %s26 = sphi 0, %s38
      %s27 = sphi 0, %s34
      %s28 = sphi 0, %s26
      %s29 = sphi 0, %s27
      %s30 = sphi 0, %s28
      %s31 = sphi 0, %s29
      %s43 = sphi 0, %s45
      %s46 = sphi 0, %s43
      %s47 = sphi 0, %s46
      %s63 = sphi 0, %s47
      %s69 = sphi 0, %s71
      %s72 = sphi 0, %s69
      %s73 = sphi 0, %s72
      %s89 = sphi 0, %s73
      %s93 = sphi 0, %s93
      %s95 = sphi 0, %s93
      %s96 = sphi 0, %s95
      %s110 = sphi 0, %s96
      %s114 = sphi 0, %s114
      %s116 = sphi 0, %s114
      %s117 = sphi 0, %s116
      %s131 = sphi 0, %s117
      %s135 = sphi 0, %s135
      %s137 = sphi 0, %s135
      %s138 = sphi 0, %s137
      %s152 = sphi 0, %s138
      %s158 = sphi 0, %s160
      %s161 = sphi 0, %s158
      %s162 = sphi 0, %s161
      %s178 = sphi 0, %s162
    $region4: #{tpu_custom_call.1} parent=1 // loop_header_branch
      %22 = sbr.rel (%p20) target = $region8
    $region5: #{tpu_custom_call.1} parent=1 // loop_body
      %s24 = ssub.s32 %s19, 1
      %s25 = ssub.s32 %s19, 2
      %s32 = sadd.s32 1, %s27
      %p33 = scmp.ge.s32.totalorder %s32, 1
      %s34 = scalar_select %p33, 0, %s32
      %s35 = sadd.s32 1, %s26
      %s36 = scalar_select %p33, %s35, %s26
      %p37 = scmp.ge.s32.totalorder %s36, 2
      %s38 = scalar_select %p37, 0, %s36
      %s39 = ssub.s32 %s26, %s38
      %s40 = ssub.s32 %s27, %s34
      %s41 = sor.u32 %s39, %s40
      %p42 = scmp.eq.s32.totalorder %s41, 0
      %s44 = sadd.s32 %s43, 1
      %s45 = scalar_select %p42, %s43, %s44
      %p48 = pneg %p42
      %p49 = scmp.eq.s32.totalorder %s19, 1
      %p50 = por %p48, %p49
      %p51 = scmp.ne.s32.totalorder %s43, %s46
      %p52 = scmp.eq.s32.totalorder %s19, 0
      %p53 = por %p51, %p52
      %p54 = scmp.ne.s32.totalorder %s43, %s46
      %p55 = scmp.eq.s32.totalorder %s24, 1
      %p56 = por %p54, %p55
      %p57 = scmp.ne.s32.totalorder %s46, %s47
      %p58 = scmp.eq.s32.totalorder %s24, 0
      %p59 = por %p57, %p58
      %p60 = scmp.ne.s32.totalorder %s46, %s47
      %p61 = scmp.eq.s32.totalorder %s25, 1
      %p62 = por %p60, %p61
      %p64 = scmp.ne.s32.totalorder %s47, %s63
      %p65 = scmp.eq.s32.totalorder %s25, 0
      %p66 = por %p64, %p65
      %s67 = ssub.s32 %s27, %s34
      %p68 = scmp.eq.s32.totalorder %s67, 0
      %s70 = sadd.s32 %s69, 1
      %s71 = scalar_select %p68, %s69, %s70
      %p74 = pneg %p68
      %p75 = scmp.eq.s32.totalorder %s19, 1
      %p76 = por %p74, %p75
      %p77 = scmp.ne.s32.totalorder %s69, %s72
      %p78 = scmp.eq.s32.totalorder %s19, 0
      %p79 = por %p77, %p78
      %p80 = scmp.ne.s32.totalorder %s69, %s72
      %p81 = scmp.eq.s32.totalorder %s24, 1
      %p82 = por %p80, %p81
      %p83 = scmp.ne.s32.totalorder %s72, %s73
      %p84 = scmp.eq.s32.totalorder %s24, 0
      %p85 = por %p83, %p84
      %p86 = scmp.ne.s32.totalorder %s72, %s73
      %p87 = scmp.eq.s32.totalorder %s25, 1
      %p88 = por %p86, %p87
      %p90 = scmp.ne.s32.totalorder %s73, %s89
      %p91 = scmp.eq.s32.totalorder %s25, 0
      %p92 = por %p90, %p91
      %s94 = sadd.s32 %s93, 1
      %p97 = scmp.eq.s32.totalorder %s19, 1
      %p98 = scmp.ne.s32.totalorder %s93, %s95
      %p99 = scmp.eq.s32.totalorder %s19, 0
      %p100 = por %p98, %p99
      %p101 = scmp.ne.s32.totalorder %s93, %s95
      %p102 = scmp.eq.s32.totalorder %s24, 1
      %p103 = por %p101, %p102
      %p104 = scmp.ne.s32.totalorder %s95, %s96
      %p105 = scmp.eq.s32.totalorder %s24, 0
      %p106 = por %p104, %p105
      %p107 = scmp.ne.s32.totalorder %s95, %s96
      %p108 = scmp.eq.s32.totalorder %s25, 1
      %p109 = por %p107, %p108
      %p111 = scmp.ne.s32.totalorder %s96, %s110
      %p112 = scmp.eq.s32.totalorder %s25, 0
      %p113 = por %p111, %p112
      %s115 = sadd.s32 %s114, 1
      %p118 = scmp.eq.s32.totalorder %s19, 1
      %p119 = scmp.ne.s32.totalorder %s114, %s116
      %p120 = scmp.eq.s32.totalorder %s19, 0
      %p121 = por %p119, %p120
      %p122 = scmp.ne.s32.totalorder %s114, %s116
      %p123 = scmp.eq.s32.totalorder %s24, 1
      %p124 = por %p122, %p123
      %p125 = scmp.ne.s32.totalorder %s116, %s117
      %p126 = scmp.eq.s32.totalorder %s24, 0
      %p127 = por %p125, %p126
      %p128 = scmp.ne.s32.totalorder %s116, %s117
      %p129 = scmp.eq.s32.totalorder %s25, 1
      %p130 = por %p128, %p129
      %p132 = scmp.ne.s32.totalorder %s117, %s131
      %p133 = scmp.eq.s32.totalorder %s25, 0
      %p134 = por %p132, %p133
      %s136 = sadd.s32 %s135, 1
      %p139 = scmp.eq.s32.totalorder %s19, 1
      %p140 = scmp.ne.s32.totalorder %s135, %s137
      %p141 = scmp.eq.s32.totalorder %s19, 0
      %p142 = por %p140, %p141
      %p143 = scmp.ne.s32.totalorder %s135, %s137
      %p144 = scmp.eq.s32.totalorder %s24, 1
      %p145 = por %p143, %p144
      %p146 = scmp.ne.s32.totalorder %s137, %s138
      %p147 = scmp.eq.s32.totalorder %s24, 0
      %p148 = por %p146, %p147
      %p149 = scmp.ne.s32.totalorder %s137, %s138
      %p150 = scmp.eq.s32.totalorder %s25, 1
      %p151 = por %p149, %p150
      %p153 = scmp.ne.s32.totalorder %s138, %s152
      %p154 = scmp.eq.s32.totalorder %s25, 0
      %p155 = por %p153, %p154
      %s156 = ssub.s32 %s26, %s38
      %p157 = scmp.eq.s32.totalorder %s156, 0
      %s159 = sadd.s32 %s158, 1
      %s160 = scalar_select %p157, %s158, %s159
      %p163 = pneg %p157
      %p164 = scmp.eq.s32.totalorder %s19, 1
      %p165 = por %p163, %p164
      %p166 = scmp.ne.s32.totalorder %s158, %s161
      %p167 = scmp.eq.s32.totalorder %s19, 0
      %p168 = por %p166, %p167
      %p169 = scmp.ne.s32.totalorder %s158, %s161
      %p170 = scmp.eq.s32.totalorder %s24, 1
      %p171 = por %p169, %p170
      %p172 = scmp.ne.s32.totalorder %s161, %s162
      %p173 = scmp.eq.s32.totalorder %s24, 0
      %p174 = por %p172, %p173
      %p175 = scmp.ne.s32.totalorder %s161, %s162
      %p176 = scmp.eq.s32.totalorder %s25, 1
      %p177 = por %p175, %p176
      %p179 = scmp.ne.s32.totalorder %s162, %s178
      %p180 = scmp.eq.s32.totalorder %s25, 0
      %p181 = por %p179, %p180
      %p182 = scmp.le.s32.totalorder 1, %s19
      %p183 = scmp.lt.s32.totalorder %s19, 3
      %p184 = pnand %p182, %p183
      %p185 = pneg %p184
      // Predicated region
      $region9: #{tpu_custom_call.1} parent=5 // pred_check
        _
      $region10: #{tpu_custom_call.1} parent=5 // pred_check_branch
        %187 = sbr.rel (%p184) target = $region12
      $region11: #{tpu_custom_call.1} parent=5 // pred_region
        %s188 = ssub.s32 %s19, 1
        // Predicated region
        $region13: #{tpu_custom_call.1} parent=11 // pred_check
          %p189 = pneg %p85
        $region14: #{tpu_custom_call.1} parent=11 // pred_check_branch
          %191 = sbr.rel (%p189) target = $region16
        $region15: #{tpu_custom_call.1} parent=11 // pred_region
          %s192 = smul.u32 32, %s29
          %s194 = ssub.s32 2048, 2048
          %195 = vsyncadd [#allocation7], %s194
          %s196 = smul.addr %s192, 64
          %s197 = scalar_lea.hbm %s1, %s196
          %s198 = sshll.u32 [#allocation6], 4
          %s199 = int_to_ptr.vmem [resolvable:$true] %s198
          %204 = dma.hbm_to_vmem [thread:$0]  %s197, 2048, %s199, [#allocation7], 64, 64, 4
        $region16: #{tpu_custom_call.1} parent=11 // pred_fallthru
          _
        // Predicated region
        $region17: #{tpu_custom_call.1} parent=11 // pred_check
          %p205 = pneg %p106
        $region18: #{tpu_custom_call.1} parent=11 // pred_check_branch
          %207 = sbr.rel (%p205) target = $region20
        $region19: #{tpu_custom_call.1} parent=11 // pred_region
          %s209 = ssub.s32 1024, 1024
          %210 = vsyncadd [#allocation7], %s209
          %s211 = sshll.u32 [#allocation8], 4
          %s212 = int_to_ptr.vmem [resolvable:$true] %s211
          %217 = dma.hbm_to_vmem [thread:$0]  %s2, 1024, %s212, [#allocation7], 64, 64, 4
        $region20: #{tpu_custom_call.1} parent=11 // pred_fallthru
          _
        // Predicated region
        $region21: #{tpu_custom_call.1} parent=11 // pred_check
          %p218 = pneg %p127
        $region22: #{tpu_custom_call.1} parent=11 // pred_check_branch
          %220 = sbr.rel (%p218) target = $region24
        $region23: #{tpu_custom_call.1} parent=11 // pred_region
          _
        $region24: #{tpu_custom_call.1} parent=11 // pred_fallthru
          _
        // Predicated region
        $region25: #{tpu_custom_call.1} parent=11 // pred_check
          %p221 = pneg %p148
        $region26: #{tpu_custom_call.1} parent=11 // pred_check_branch
          %223 = sbr.rel (%p221) target = $region28
        $region27: #{tpu_custom_call.1} parent=11 // pred_region
          %s225 = ssub.s32 1024, 1024
          %226 = vsyncadd [#allocation10], %s225
          %s227 = sshll.u32 [#allocation9], 4
          %s228 = int_to_ptr.vmem [resolvable:$true] %s227
          %233 = dma.hbm_to_vmem [thread:$0]  %s4, 1024, %s228, [#allocation10], 64, 64, 4
        $region28: #{tpu_custom_call.1} parent=11 // pred_fallthru
          _
      $region12: #{tpu_custom_call.1} parent=5 // pred_fallthru
        _
      %p234 = scmp.lt.s32.totalorder %s19, 2
      // Predicated region
      $region29: #{tpu_custom_call.1} parent=5 // pred_check
        %p235 = pneg %p234
      $region30: #{tpu_custom_call.1} parent=5 // pred_check_branch
        %237 = sbr.rel (%p235) target = $region32
      $region31: #{tpu_custom_call.1} parent=5 // pred_region
        // Predicated region
        $region33: #{tpu_custom_call.1} parent=31 // pred_check
          %p238 = pneg %p53
        $region34: #{tpu_custom_call.1} parent=31 // pred_check_branch
          %240 = sbr.rel (%p238) target = $region36
        $region35: #{tpu_custom_call.1} parent=31 // pred_region
          %s241 = sand.u32 %s43, 1
          %s242 = scalar_lea.sflag [#allocation4], %s241
          %s243 = sand.u32 %s43, 1
          %s244 = smul.addr %s243, 128
          %s245 = scalar_lea.vmem [#allocation3], %s244
          %s246 = smul.u32 16, %s26
          %s247 = smul.u32 2, %s27
          %s249 = ssub.s32 2048, 2048
          %250 = vsyncadd %s242, %s249
          %s251 = smul.addr %s246, 2
          %s252 = sadd.s32 %s247, %s251
          %s253 = smul.addr %s252, 64
          %s254 = scalar_lea.hbm %s0, %s253
          %s255 = sshll.u32 %s245, 4
          %s256 = int_to_ptr.vmem [resolvable:$true] %s255
          %261 = dma.hbm_to_vmem [thread:$0]  %s254, 2048, %s256, %s242, 128, 128, 8
        $region36: #{tpu_custom_call.1} parent=31 // pred_fallthru
          _
      $region32: #{tpu_custom_call.1} parent=5 // pred_fallthru
        _
      %p262 = scmp.le.s32.totalorder 1, %s19
      %p263 = scmp.lt.s32.totalorder %s19, 3
      %p264 = pnand %p262, %p263
      %p265 = pneg %p264
      // Predicated region
      $region37: #{tpu_custom_call.1} parent=5 // pred_check
        _
      $region38: #{tpu_custom_call.1} parent=5 // pred_check_branch
        %267 = sbr.rel (%p264) target = $region40
      $region39: #{tpu_custom_call.1} parent=5 // pred_region
        %s268 = ssub.s32 %s19, 1
        %s269 = sand.u32 %s46, 1
        %s270 = scalar_lea.sflag [#allocation4], %s269
        %s271 = sand.u32 %s46, 1
        %s272 = smul.addr %s271, 128
        %s273 = scalar_lea.vmem [#allocation3], %s272
        // Predicated region
        $region41: #{tpu_custom_call.1} parent=39 // pred_check
          %p274 = pneg %p59
        $region42: #{tpu_custom_call.1} parent=39 // pred_check_branch
          %276 = sbr.rel (%p274) target = $region44
        $region43: #{tpu_custom_call.1} parent=39 // pred_region
          %277 = dma.done %s270, 2048
        $region44: #{tpu_custom_call.1} parent=39 // pred_fallthru
          _
        // Predicated region
        $region45: #{tpu_custom_call.1} parent=39 // pred_check
          %p278 = pneg %p85
        $region46: #{tpu_custom_call.1} parent=39 // pred_check_branch
          %280 = sbr.rel (%p278) target = $region48
        $region47: #{tpu_custom_call.1} parent=39 // pred_region
          %281 = dma.done [#allocation7], 2048
        $region48: #{tpu_custom_call.1} parent=39 // pred_fallthru
          _
        // Predicated region
        $region49: #{tpu_custom_call.1} parent=39 // pred_check
          %p282 = pneg %p106
        $region50: #{tpu_custom_call.1} parent=39 // pred_check_branch
          %284 = sbr.rel (%p282) target = $region52
        $region51: #{tpu_custom_call.1} parent=39 // pred_region
          %285 = dma.done [#allocation7], 1024
        $region52: #{tpu_custom_call.1} parent=39 // pred_fallthru
          _
        // Predicated region
        $region53: #{tpu_custom_call.1} parent=39 // pred_check
          %p286 = pneg %p148
        $region54: #{tpu_custom_call.1} parent=39 // pred_check_branch
          %288 = sbr.rel (%p286) target = $region56
        $region55: #{tpu_custom_call.1} parent=39 // pred_region
          %289 = dma.done [#allocation10], 1024
        $region56: #{tpu_custom_call.1} parent=39 // pred_fallthru
          _
        %s290 = sand.u32 %s46, 1
        %s291 = scalar_lea.sflag [#allocation4], %s290
        %s292 = sand.u32 %s46, 1
        %s293 = smul.addr %s292, 128
        %s294 = scalar_lea.vmem [#allocation3], %s293
        %p295 = pneg %p59
        %p296 = pneg %p56
        %p297 = pneg %p85
        %p298 = pneg %p82
        %p299 = pneg %p106
        %p300 = pneg %p103
        %p301 = pneg %p127
        %p302 = pneg %p124
        %p303 = pneg %p148
        %p304 = pneg %p145
        %p305 = pneg %p174
        %p306 = pneg %p171
        %s307 = sand.u32 %s161, 1
        %s308 = scalar_lea.sflag [#allocation5], %s307
        %s309 = sand.u32 %s161, 1
        %s310 = smul.addr %s309, 64
        %s311 = scalar_lea.vmem [#allocation11], %s310
        %s312 = smul.u32 16, %s28
        %s313 = smul.u32 2, %s29
        %s314 = smul.u32 32, %s29
        %s315 = smul.u32 16, %s28
        %p317 = scmp.eq.s32.totalorder %s29, 0
        // Predicated region
        $region57: #{tpu_custom_call.1} parent=39 // pred_check
          %p318 = pneg %p317
        $region58: #{tpu_custom_call.1} parent=39 // pred_check_branch
          %320 = sbr.rel (%p318) target = $region60
        $region59: #{tpu_custom_call.1} parent=39 // pred_region
          %321 = vst [vmem:[#allocation2] sm:$0xff] 0.0
          %322 = vst [vmem:[#allocation2 + $0x8] sm:$0xff] 0.0
          %323 = vst [vmem:[#allocation2 + $0x10] sm:$0xff] 0.0
          %324 = vst [vmem:[#allocation2 + $0x18] sm:$0xff] 0.0
          %325 = vst [vmem:[#allocation2 + $0x20] sm:$0xff] 0.0
          %326 = vst [vmem:[#allocation2 + $0x28] sm:$0xff] 0.0
          %327 = vst [vmem:[#allocation2 + $0x30] sm:$0xff] 0.0
          %328 = vst [vmem:[#allocation2 + $0x38] sm:$0xff] 0.0
          %329 = vst [vmem:[#allocation2 + $0x40] sm:$0xff] 0.0
          %330 = vst [vmem:[#allocation2 + $0x48] sm:$0xff] 0.0
          %331 = vst [vmem:[#allocation2 + $0x50] sm:$0xff] 0.0
          %332 = vst [vmem:[#allocation2 + $0x58] sm:$0xff] 0.0
          %333 = vst [vmem:[#allocation2 + $0x60] sm:$0xff] 0.0
          %334 = vst [vmem:[#allocation2 + $0x68] sm:$0xff] 0.0
          %335 = vst [vmem:[#allocation2 + $0x70] sm:$0xff] 0.0
          %336 = vst [vmem:[#allocation2 + $0x78] sm:$0xff] 0.0
        $region60: #{tpu_custom_call.1} parent=39 // pred_fallthru
          _
        %v337 = vld [vmem:[#allocation6] sm:$0xf]
        %v338 = vld [vmem:[#allocation6 + $0x4] sm:$0xf]
        %v339 = vld [vmem:[#allocation6 + $0x8] sm:$0xf]
        %v340 = vld [vmem:[#allocation6 + $0xc] sm:$0xf]
        %v341 = vld [vmem:[#allocation6 + $0x10] sm:$0xf]
        %v342 = vld [vmem:[#allocation6 + $0x14] sm:$0xf]
        %v343 = vld [vmem:[#allocation6 + $0x18] sm:$0xf]
        %v344 = vld [vmem:[#allocation6 + $0x1c] sm:$0xf]
        %v345 = vld [vmem:[#allocation6 + $0x20] sm:$0xf]
        %v346 = vld [vmem:[#allocation6 + $0x24] sm:$0xf]
        %v347 = vld [vmem:[#allocation6 + $0x28] sm:$0xf]
        %v348 = vld [vmem:[#allocation6 + $0x2c] sm:$0xf]
        %v349 = vld [vmem:[#allocation6 + $0x30] sm:$0xf]
        %v350 = vld [vmem:[#allocation6 + $0x34] sm:$0xf]
        %v351 = vld [vmem:[#allocation6 + $0x38] sm:$0xf]
        %v352 = vld [vmem:[#allocation6 + $0x3c] sm:$0xf]
        %v353 = vld [vmem:[#allocation6 + $0x40] sm:$0xf]
        %v354 = vld [vmem:[#allocation6 + $0x44] sm:$0xf]
        %v355 = vld [vmem:[#allocation6 + $0x48] sm:$0xf]
        %v356 = vld [vmem:[#allocation6 + $0x4c] sm:$0xf]
        %v357 = vld [vmem:[#allocation6 + $0x50] sm:$0xf]
        %v358 = vld [vmem:[#allocation6 + $0x54] sm:$0xf]
        %v359 = vld [vmem:[#allocation6 + $0x58] sm:$0xf]
        %v360 = vld [vmem:[#allocation6 + $0x5c] sm:$0xf]
        %v361 = vld [vmem:[#allocation6 + $0x60] sm:$0xf]
        %v362 = vld [vmem:[#allocation6 + $0x64] sm:$0xf]
        %v363 = vld [vmem:[#allocation6 + $0x68] sm:$0xf]
        %v364 = vld [vmem:[#allocation6 + $0x6c] sm:$0xf]
        %v365 = vld [vmem:[#allocation6 + $0x70] sm:$0xf]
        %v366 = vld [vmem:[#allocation6 + $0x74] sm:$0xf]
        %v367 = vld [vmem:[#allocation6 + $0x78] sm:$0xf]
        %v368 = vld [vmem:[#allocation6 + $0x7c] sm:$0xf]
        %v369 = vld [vmem:[#allocation8] sm:$0xf]
        %v370 = vld [vmem:[#allocation8 + $0x4] sm:$0xf]
        %v371 = vld [vmem:[#allocation8 + $0x8] sm:$0xf]
        %v372 = vld [vmem:[#allocation8 + $0xc] sm:$0xf]
        %v373 = vld [vmem:[#allocation8 + $0x10] sm:$0xf]
        %v374 = vld [vmem:[#allocation8 + $0x14] sm:$0xf]
        %v375 = vld [vmem:[#allocation8 + $0x18] sm:$0xf]
        %v376 = vld [vmem:[#allocation8 + $0x1c] sm:$0xf]
        %v377 = vld [vmem:[#allocation8 + $0x20] sm:$0xf]
        %v378 = vld [vmem:[#allocation8 + $0x24] sm:$0xf]
        %v379 = vld [vmem:[#allocation8 + $0x28] sm:$0xf]
        %v380 = vld [vmem:[#allocation8 + $0x2c] sm:$0xf]
        %v381 = vld [vmem:[#allocation8 + $0x30] sm:$0xf]
        %v382 = vld [vmem:[#allocation8 + $0x34] sm:$0xf]
        %v383 = vld [vmem:[#allocation8 + $0x38] sm:$0xf]
        %v384 = vld [vmem:[#allocation8 + $0x3c] sm:$0xf]
        %v417 = vunpack.c.l.b16 %v337
        %v418 = vunpack.c.l.b16 %v338
        %v419 = vunpack.c.l.b16 %v339
        %v420 = vunpack.c.l.b16 %v340
        %v421 = vunpack.c.l.b16 %v341
        %v422 = vunpack.c.l.b16 %v342
        %v423 = vunpack.c.l.b16 %v343
        %v424 = vunpack.c.l.b16 %v344
        %v425 = vunpack.c.l.b16 %v345
        %v426 = vunpack.c.l.b16 %v346
        %v427 = vunpack.c.l.b16 %v347
        %v428 = vunpack.c.l.b16 %v348
        %v429 = vunpack.c.l.b16 %v349
        %v430 = vunpack.c.l.b16 %v350
        %v431 = vunpack.c.l.b16 %v351
        %v432 = vunpack.c.l.b16 %v352
        %v433 = vunpack.c.l.b16 %v353
        %v434 = vunpack.c.l.b16 %v354
        %v435 = vunpack.c.l.b16 %v355
        %v436 = vunpack.c.l.b16 %v356
        %v437 = vunpack.c.l.b16 %v357
        %v438 = vunpack.c.l.b16 %v358
        %v439 = vunpack.c.l.b16 %v359
        %v440 = vunpack.c.l.b16 %v360
        %v441 = vunpack.c.l.b16 %v361
        %v442 = vunpack.c.l.b16 %v362
        %v443 = vunpack.c.l.b16 %v363
        %v444 = vunpack.c.l.b16 %v364
        %v445 = vunpack.c.l.b16 %v365
        %v446 = vunpack.c.l.b16 %v366
        %v447 = vunpack.c.l.b16 %v367
        %v448 = vunpack.c.l.b16 %v368
        %v449 = vpack.c.b16 %v418, %v417
        %v450 = vpack.c.b16 %v420, %v419
        %v451 = vpack.c.b16 %v422, %v421
        %v452 = vpack.c.b16 %v424, %v423
        %v453 = vpack.c.b16 %v426, %v425
        %v454 = vpack.c.b16 %v428, %v427
        %v455 = vpack.c.b16 %v430, %v429
        %v456 = vpack.c.b16 %v432, %v431
        %v457 = vpack.c.b16 %v434, %v433
        %v458 = vpack.c.b16 %v436, %v435
        %v459 = vpack.c.b16 %v438, %v437
        %v460 = vpack.c.b16 %v440, %v439
        %v461 = vpack.c.b16 %v442, %v441
        %v462 = vpack.c.b16 %v444, %v443
        %v463 = vpack.c.b16 %v446, %v445
        %v464 = vpack.c.b16 %v448, %v447
        %v497 = vunpack.c.l.b16 %v369
        %v498 = vunpack.c.l.b16 %v370
        %v499 = vunpack.c.l.b16 %v371
        %v500 = vunpack.c.l.b16 %v372
        %v501 = vunpack.c.l.b16 %v373
        %v502 = vunpack.c.l.b16 %v374
        %v503 = vunpack.c.l.b16 %v375
        %v504 = vunpack.c.l.b16 %v376
        %v505 = vunpack.c.l.b16 %v377
        %v506 = vunpack.c.l.b16 %v378
        %v507 = vunpack.c.l.b16 %v379
        %v508 = vunpack.c.l.b16 %v380
        %v509 = vunpack.c.l.b16 %v381
        %v510 = vunpack.c.l.b16 %v382
        %v511 = vunpack.c.l.b16 %v383
        %v512 = vunpack.c.l.b16 %v384
        %v513 = vpack.c.b16 %v498, %v497
        %v514 = vpack.c.b16 %v500, %v499
        %v515 = vpack.c.b16 %v502, %v501
        %v516 = vpack.c.b16 %v504, %v503
        %v517 = vpack.c.b16 %v506, %v505
        %v518 = vpack.c.b16 %v508, %v507
        %v519 = vpack.c.b16 %v510, %v509
        %v520 = vpack.c.b16 %v512, %v511
        %529 = vmatprep.subr.bf16.mxu0 0
        %530 = vmatpush1.bf16.msra.mxu0 %v513
        %531 = vmatprep.subr.bf16.mxu0 0
        %532 = vmatpush1.bf16.msra.mxu0 %v514
        %533 = vmatprep.subr.bf16.mxu0 0
        %534 = vmatpush1.bf16.msra.mxu0 %v515
        %535 = vmatprep.subr.bf16.mxu0 0
        %536 = vmatpush1.bf16.msra.mxu0 %v516
        %537 = vmatprep.subr.bf16.mxu0 0
        %538 = vmatpush1.bf16.msra.mxu0 %v517
        %539 = vmatprep.subr.bf16.mxu0 0
        %540 = vmatpush1.bf16.msra.mxu0 %v518
        %541 = vmatprep.subr.bf16.mxu0 0
        %542 = vmatpush1.bf16.msra.mxu0 %v519
        %543 = vmatprep.subr.bf16.mxu0 0
        %544 = vmatpush1.bf16.msra.mxu0 %v520
        %545 = vmatprep.subr.bf16.mxu0 0
        %546 = vmatpush1.bf16.msra.mxu0 0
        %547 = vmatprep.subr.bf16.mxu0 0
        %548 = vmatpush1.bf16.msra.mxu0 0
        %549 = vmatprep.subr.bf16.mxu0 0
        %550 = vmatpush1.bf16.msra.mxu0 0
        %551 = vmatprep.subr.bf16.mxu0 0
        %552 = vmatpush1.bf16.msra.mxu0 0
        %553 = vmatprep.subr.bf16.mxu0 0
        %554 = vmatpush1.bf16.msra.mxu0 0
        %555 = vmatprep.subr.bf16.mxu0 0
        %556 = vmatpush1.bf16.msra.mxu0 0
        %557 = vmatprep.subr.bf16.mxu0 0
        %558 = vmatpush1.bf16.msra.mxu0 0
        %559 = vmatprep.subr.bf16.mxu0 0
        %560 = vmatpush1.bf16.msra.mxu0 0
        %561 = vmatprep.mubr.bf16.mxu0 0
        %562 = vmatmul.mubr.bf16.gmra.mrb[0].mxu0 %v449
        %v563 = vpop.f32.mrb[0].mxu0
        %v564 = vadd.f32 0.0, %v563
        %v565 = vpop.f32.mrb[0].mxu0
        %v566 = vpop.f32.mrb[0].mxu0
        %v567 = vadd.f32 0.0, %v566
        %v568 = vpop.f32.mrb[0].mxu0
        %569 = vmatprep.mubr.bf16.mxu0 0
        %570 = vmatmul.mubr.bf16.gmra.mrb[0].mxu0 %v450
        %v571 = vpop.f32.mrb[0].mxu0
        %v572 = vadd.f32 0.0, %v571
        %v573 = vpop.f32.mrb[0].mxu0
        %v574 = vpop.f32.mrb[0].mxu0
        %v575 = vadd.f32 0.0, %v574
        %v576 = vpop.f32.mrb[0].mxu0
        %577 = vmatprep.mubr.bf16.mxu0 0
        %578 = vmatmul.mubr.bf16.gmra.mrb[0].mxu0 %v451
        %v579 = vpop.f32.mrb[0].mxu0
        %v580 = vadd.f32 0.0, %v579
        %v581 = vpop.f32.mrb[0].mxu0
        %v582 = vpop.f32.mrb[0].mxu0
        %v583 = vadd.f32 0.0, %v582
        %v584 = vpop.f32.mrb[0].mxu0
        %585 = vmatprep.mubr.bf16.mxu0 0
        %586 = vmatmul.mubr.bf16.gmra.mrb[0].mxu0 %v452
        %v587 = vpop.f32.mrb[0].mxu0
        %v588 = vadd.f32 0.0, %v587
        %v589 = vpop.f32.mrb[0].mxu0
        %v590 = vpop.f32.mrb[0].mxu0
        %v591 = vadd.f32 0.0, %v590
        %v592 = vpop.f32.mrb[0].mxu0
        %593 = vmatprep.mubr.bf16.mxu0 0
        %594 = vmatmul.mubr.bf16.gmra.mrb[0].mxu0 %v453
        %v595 = vpop.f32.mrb[0].mxu0
        %v596 = vadd.f32 0.0, %v595
        %v597 = vpop.f32.mrb[0].mxu0
        %v598 = vpop.f32.mrb[0].mxu0
        %v599 = vadd.f32 0.0, %v598
        %v600 = vpop.f32.mrb[0].mxu0
        %601 = vmatprep.mubr.bf16.mxu0 0
        %602 = vmatmul.mubr.bf16.gmra.mrb[0].mxu0 %v454
        %v603 = vpop.f32.mrb[0].mxu0
        %v604 = vadd.f32 0.0, %v603
        %v605 = vpop.f32.mrb[0].mxu0
        %v606 = vpop.f32.mrb[0].mxu0
        %v607 = vadd.f32 0.0, %v606
        %v608 = vpop.f32.mrb[0].mxu0
        %609 = vmatprep.mubr.bf16.mxu0 0
        %610 = vmatmul.mubr.bf16.gmra.mrb[0].mxu0 %v455
        %v611 = vpop.f32.mrb[0].mxu0
        %v612 = vadd.f32 0.0, %v611
        %v613 = vpop.f32.mrb[0].mxu0
        %v614 = vpop.f32.mrb[0].mxu0
        %v615 = vadd.f32 0.0, %v614
        %v616 = vpop.f32.mrb[0].mxu0
        %617 = vmatprep.mubr.bf16.mxu0 0
        %618 = vmatmul.mubr.bf16.gmra.mrb[0].mxu0 %v456
        %v619 = vpop.f32.mrb[0].mxu0
        %v620 = vadd.f32 0.0, %v619
        %v621 = vpop.f32.mrb[0].mxu0
        %v622 = vpop.f32.mrb[0].mxu0
        %v623 = vadd.f32 0.0, %v622
        %v624 = vpop.f32.mrb[0].mxu0
        %625 = vmatprep.mubr.bf16.mxu0 0
        %626 = vmatmul.mubr.bf16.gmra.mrb[0].mxu0 %v457
        %v627 = vpop.f32.mrb[0].mxu0
        %v628 = vadd.f32 0.0, %v627
        %v629 = vpop.f32.mrb[0].mxu0
        %v630 = vpop.f32.mrb[0].mxu0
        %v631 = vadd.f32 0.0, %v630
        %v632 = vpop.f32.mrb[0].mxu0
        %633 = vmatprep.mubr.bf16.mxu0 0
        %634 = vmatmul.mubr.bf16.gmra.mrb[0].mxu0 %v458
        %v635 = vpop.f32.mrb[0].mxu0
        %v636 = vadd.f32 0.0, %v635
        %v637 = vpop.f32.mrb[0].mxu0
        %v638 = vpop.f32.mrb[0].mxu0
        %v639 = vadd.f32 0.0, %v638
        %v640 = vpop.f32.mrb[0].mxu0
        %641 = vmatprep.mubr.bf16.mxu0 0
        %642 = vmatmul.mubr.bf16.gmra.mrb[0].mxu0 %v459
        %v643 = vpop.f32.mrb[0].mxu0
        %v644 = vadd.f32 0.0, %v643
        %v645 = vpop.f32.mrb[0].mxu0
        %v646 = vpop.f32.mrb[0].mxu0
        %v647 = vadd.f32 0.0, %v646
        %v648 = vpop.f32.mrb[0].mxu0
        %649 = vmatprep.mubr.bf16.mxu0 0
        %650 = vmatmul.mubr.bf16.gmra.mrb[0].mxu0 %v460
        %v651 = vpop.f32.mrb[0].mxu0
        %v652 = vadd.f32 0.0, %v651
        %v653 = vpop.f32.mrb[0].mxu0
        %v654 = vpop.f32.mrb[0].mxu0
        %v655 = vadd.f32 0.0, %v654
        %v656 = vpop.f32.mrb[0].mxu0
        %657 = vmatprep.mubr.bf16.mxu0 0
        %658 = vmatmul.mubr.bf16.gmra.mrb[0].mxu0 %v461
        %v659 = vpop.f32.mrb[0].mxu0
        %v660 = vadd.f32 0.0, %v659
        %v661 = vpop.f32.mrb[0].mxu0
        %v662 = vpop.f32.mrb[0].mxu0
        %v663 = vadd.f32 0.0, %v662
        %v664 = vpop.f32.mrb[0].mxu0
        %665 = vmatprep.mubr.bf16.mxu0 0
        %666 = vmatmul.mubr.bf16.gmra.mrb[0].mxu0 %v462
        %v667 = vpop.f32.mrb[0].mxu0
        %v668 = vadd.f32 0.0, %v667
        %v669 = vpop.f32.mrb[0].mxu0
        %v670 = vpop.f32.mrb[0].mxu0
        %v671 = vadd.f32 0.0, %v670
        %v672 = vpop.f32.mrb[0].mxu0
        %673 = vmatprep.mubr.bf16.mxu0 0
        %674 = vmatmul.mubr.bf16.gmra.mrb[0].mxu0 %v463
        %v675 = vpop.f32.mrb[0].mxu0
        %v676 = vadd.f32 0.0, %v675
        %v677 = vpop.f32.mrb[0].mxu0
        %v678 = vpop.f32.mrb[0].mxu0
        %v679 = vadd.f32 0.0, %v678
        %v680 = vpop.f32.mrb[0].mxu0
        %681 = vmatprep.mubr.bf16.mxu0 0
        %682 = vmatmul.mubr.bf16.gmra.mrb[0].mxu0 %v464
        %v683 = vpop.f32.mrb[0].mxu0
        %v684 = vadd.f32 0.0, %v683
        %v685 = vpop.f32.mrb[0].mxu0
        %v686 = vpop.f32.mrb[0].mxu0
        %v687 = vadd.f32 0.0, %v686
        %v688 = vpop.f32.mrb[0].mxu0
        %689 = vdwg.mxu0
        %v690 = vld [vmem:[#allocation2] sm:$0xff]
        %v691 = vld [vmem:[#allocation2 + $0x8] sm:$0xff]
        %v692 = vld [vmem:[#allocation2 + $0x10] sm:$0xff]
        %v693 = vld [vmem:[#allocation2 + $0x18] sm:$0xff]
        %v694 = vld [vmem:[#allocation2 + $0x20] sm:$0xff]
        %v695 = vld [vmem:[#allocation2 + $0x28] sm:$0xff]
        %v696 = vld [vmem:[#allocation2 + $0x30] sm:$0xff]
        %v697 = vld [vmem:[#allocation2 + $0x38] sm:$0xff]
        %v698 = vld [vmem:[#allocation2 + $0x40] sm:$0xff]
        %v699 = vld [vmem:[#allocation2 + $0x48] sm:$0xff]
        %v700 = vld [vmem:[#allocation2 + $0x50] sm:$0xff]
        %v701 = vld [vmem:[#allocation2 + $0x58] sm:$0xff]
        %v702 = vld [vmem:[#allocation2 + $0x60] sm:$0xff]
        %v703 = vld [vmem:[#allocation2 + $0x68] sm:$0xff]
        %v704 = vld [vmem:[#allocation2 + $0x70] sm:$0xff]
        %v705 = vld [vmem:[#allocation2 + $0x78] sm:$0xff]
        %v706 = vld [vmem:[%s273] sm:$0xff]
        %v707 = vld [vmem:[%s273 + $0x8] sm:$0xff]
        %v708 = vld [vmem:[%s273 + $0x10] sm:$0xff]
        %v709 = vld [vmem:[%s273 + $0x18] sm:$0xff]
        %v710 = vld [vmem:[%s273 + $0x20] sm:$0xff]
        %v711 = vld [vmem:[%s273 + $0x28] sm:$0xff]
        %v712 = vld [vmem:[%s273 + $0x30] sm:$0xff]
        %v713 = vld [vmem:[%s273 + $0x38] sm:$0xff]
        %v714 = vld [vmem:[%s273 + $0x40] sm:$0xff]
        %v715 = vld [vmem:[%s273 + $0x48] sm:$0xff]
        %v716 = vld [vmem:[%s273 + $0x50] sm:$0xff]
        %v717 = vld [vmem:[%s273 + $0x58] sm:$0xff]
        %v718 = vld [vmem:[%s273 + $0x60] sm:$0xff]
        %v719 = vld [vmem:[%s273 + $0x68] sm:$0xff]
        %v720 = vld [vmem:[%s273 + $0x70] sm:$0xff]
        %v721 = vld [vmem:[%s273 + $0x78] sm:$0xff]
        %v722 = vpack.c.bf16 %v567, %v564
        %v723 = vpack.c.bf16 %v575, %v572
        %v724 = vpack.c.bf16 %v583, %v580
        %v725 = vpack.c.bf16 %v591, %v588
        %v726 = vpack.c.bf16 %v599, %v596
        %v727 = vpack.c.bf16 %v607, %v604
        %v728 = vpack.c.bf16 %v615, %v612
        %v729 = vpack.c.bf16 %v623, %v620
        %v730 = vpack.c.bf16 %v631, %v628
        %v731 = vpack.c.bf16 %v639, %v636
        %v732 = vpack.c.bf16 %v647, %v644
        %v733 = vpack.c.bf16 %v655, %v652
        %v734 = vpack.c.bf16 %v663, %v660
        %v735 = vpack.c.bf16 %v671, %v668
        %v736 = vpack.c.bf16 %v679, %v676
        %v737 = vpack.c.bf16 %v687, %v684
        %v754 = vunpack.c.l.b16 %v706
        %v755 = vunpack.c.h.b16 %v706
        %v756 = vunpack.c.l.b16 %v707
        %v757 = vunpack.c.h.b16 %v707
        %v758 = vunpack.c.l.b16 %v708
        %v759 = vunpack.c.h.b16 %v708
        %v760 = vunpack.c.l.b16 %v709
        %v761 = vunpack.c.h.b16 %v709
        %v762 = vunpack.c.l.b16 %v710
        %v763 = vunpack.c.h.b16 %v710
        %v764 = vunpack.c.l.b16 %v711
        %v765 = vunpack.c.h.b16 %v711
        %v766 = vunpack.c.l.b16 %v712
        %v767 = vunpack.c.h.b16 %v712
        %v768 = vunpack.c.l.b16 %v713
        %v769 = vunpack.c.h.b16 %v713
        %v770 = vunpack.c.l.b16 %v714
        %v771 = vunpack.c.h.b16 %v714
        %v772 = vunpack.c.l.b16 %v715
        %v773 = vunpack.c.h.b16 %v715
        %v774 = vunpack.c.l.b16 %v716
        %v775 = vunpack.c.h.b16 %v716
        %v776 = vunpack.c.l.b16 %v717
        %v777 = vunpack.c.h.b16 %v717
        %v778 = vunpack.c.l.b16 %v718
        %v779 = vunpack.c.h.b16 %v718
        %v780 = vunpack.c.l.b16 %v719
        %v781 = vunpack.c.h.b16 %v719
        %v782 = vunpack.c.l.b16 %v720
        %v783 = vunpack.c.h.b16 %v720
        %v784 = vunpack.c.l.b16 %v721
        %v785 = vunpack.c.h.b16 %v721
        %v786 = vpack.c.b16 %v756, %v754
        %v787 = vpack.c.b16 %v757, %v755
        %v788 = vpack.c.b16 %v760, %v758
        %v789 = vpack.c.b16 %v761, %v759
        %v790 = vpack.c.b16 %v764, %v762
        %v791 = vpack.c.b16 %v765, %v763
        %v792 = vpack.c.b16 %v768, %v766
        %v793 = vpack.c.b16 %v769, %v767
        %v794 = vpack.c.b16 %v772, %v770
        %v795 = vpack.c.b16 %v773, %v771
        %v796 = vpack.c.b16 %v776, %v774
        %v797 = vpack.c.b16 %v777, %v775
        %v798 = vpack.c.b16 %v780, %v778
        %v799 = vpack.c.b16 %v781, %v779
        %v800 = vpack.c.b16 %v784, %v782
        %v801 = vpack.c.b16 %v785, %v783
        %818 = vmatprep.subr.bf16.mxu0 0
        %819 = vmatpush1.bf16.msra.mxu0 %v722
        %820 = vmatprep.subr.bf16.mxu0 0
        %821 = vmatpush1.bf16.msra.mxu0 %v723
        %822 = vmatprep.subr.bf16.mxu0 0
        %823 = vmatpush1.bf16.msra.mxu0 %v724
        %824 = vmatprep.subr.bf16.mxu0 0
        %825 = vmatpush1.bf16.msra.mxu0 %v725
        %826 = vmatprep.subr.bf16.mxu0 0
        %827 = vmatpush1.bf16.msra.mxu0 %v726
        %828 = vmatprep.subr.bf16.mxu0 0
        %829 = vmatpush1.bf16.msra.mxu0 %v727
        %830 = vmatprep.subr.bf16.mxu0 0
        %831 = vmatpush1.bf16.msra.mxu0 %v728
        %832 = vmatprep.subr.bf16.mxu0 0
        %833 = vmatpush1.bf16.msra.mxu0 %v729
        %834 = vmatprep.subr.bf16.mxu0 0
        %835 = vmatpush1.bf16.msra.mxu0 %v730
        %836 = vmatprep.subr.bf16.mxu0 0
        %837 = vmatpush1.bf16.msra.mxu0 %v731
        %838 = vmatprep.subr.bf16.mxu0 0
        %839 = vmatpush1.bf16.msra.mxu0 %v732
        %840 = vmatprep.subr.bf16.mxu0 0
        %841 = vmatpush1.bf16.msra.mxu0 %v733
        %842 = vmatprep.subr.bf16.mxu0 0
        %843 = vmatpush1.bf16.msra.mxu0 %v734
        %844 = vmatprep.subr.bf16.mxu0 0
        %845 = vmatpush1.bf16.msra.mxu0 %v735
        %846 = vmatprep.subr.bf16.mxu0 0
        %847 = vmatpush1.bf16.msra.mxu0 %v736
        %848 = vmatprep.subr.bf16.mxu0 0
        %849 = vmatpush1.bf16.msra.mxu0 %v737
        %850 = vmatprep.mubr.bf16.mxu0 %v787
        %851 = vmatmul.mubr.bf16.gmra.mrb[0].mxu0 %v786
        %v852 = vpop.f32.mrb[0].mxu0
        %v853 = vadd.f32 0.0, %v852
        %v854 = vpop.f32.mrb[0].mxu0
        %v855 = vpop.f32.mrb[0].mxu0
        %v856 = vadd.f32 0.0, %v855
        %v857 = vpop.f32.mrb[0].mxu0
        %858 = vmatprep.mubr.bf16.mxu0 %v789
        %859 = vmatmul.mubr.bf16.gmra.mrb[0].mxu0 %v788
        %v860 = vpop.f32.mrb[0].mxu0
        %v861 = vadd.f32 0.0, %v860
        %v862 = vpop.f32.mrb[0].mxu0
        %v863 = vpop.f32.mrb[0].mxu0
        %v864 = vadd.f32 0.0, %v863
        %v865 = vpop.f32.mrb[0].mxu0
        %866 = vmatprep.mubr.bf16.mxu0 %v791
        %867 = vmatmul.mubr.bf16.gmra.mrb[0].mxu0 %v790
        %v868 = vpop.f32.mrb[0].mxu0
        %v869 = vadd.f32 0.0, %v868
        %v870 = vpop.f32.mrb[0].mxu0
        %v871 = vpop.f32.mrb[0].mxu0
        %v872 = vadd.f32 0.0, %v871
        %v873 = vpop.f32.mrb[0].mxu0
        %874 = vmatprep.mubr.bf16.mxu0 %v793
        %875 = vmatmul.mubr.bf16.gmra.mrb[0].mxu0 %v792
        %v876 = vpop.f32.mrb[0].mxu0
        %v877 = vadd.f32 0.0, %v876
        %v878 = vpop.f32.mrb[0].mxu0
        %v879 = vpop.f32.mrb[0].mxu0
        %v880 = vadd.f32 0.0, %v879
        %v881 = vpop.f32.mrb[0].mxu0
        %882 = vmatprep.mubr.bf16.mxu0 %v795
        %883 = vmatmul.mubr.bf16.gmra.mrb[0].mxu0 %v794
        %v884 = vpop.f32.mrb[0].mxu0
        %v885 = vadd.f32 0.0, %v884
        %v886 = vpop.f32.mrb[0].mxu0
        %v887 = vpop.f32.mrb[0].mxu0
        %v888 = vadd.f32 0.0, %v887
        %v889 = vpop.f32.mrb[0].mxu0
        %890 = vmatprep.mubr.bf16.mxu0 %v797
        %891 = vmatmul.mubr.bf16.gmra.mrb[0].mxu0 %v796
        %v892 = vpop.f32.mrb[0].mxu0
        %v893 = vadd.f32 0.0, %v892
        %v894 = vpop.f32.mrb[0].mxu0
        %v895 = vpop.f32.mrb[0].mxu0
        %v896 = vadd.f32 0.0, %v895
        %v897 = vpop.f32.mrb[0].mxu0
        %898 = vmatprep.mubr.bf16.mxu0 %v799
        %899 = vmatmul.mubr.bf16.gmra.mrb[0].mxu0 %v798
        %v900 = vpop.f32.mrb[0].mxu0
        %v901 = vadd.f32 0.0, %v900
        %v902 = vpop.f32.mrb[0].mxu0
        %v903 = vpop.f32.mrb[0].mxu0
        %v904 = vadd.f32 0.0, %v903
        %v905 = vpop.f32.mrb[0].mxu0
        %906 = vmatprep.mubr.bf16.mxu0 %v801
        %907 = vmatmul.mubr.bf16.gmra.mrb[0].mxu0 %v800
        %v908 = vpop.f32.mrb[0].mxu0
        %v909 = vadd.f32 0.0, %v908
        %v910 = vpop.f32.mrb[0].mxu0
        %v911 = vpop.f32.mrb[0].mxu0
        %v912 = vadd.f32 0.0, %v911
        %v913 = vpop.f32.mrb[0].mxu0
        %914 = vdwg.mxu0
        %v915 = vadd.f32 %v690, %v853
        %v916 = vadd.f32 %v691, %v856
        %v917 = vadd.f32 %v692, %v861
        %v918 = vadd.f32 %v693, %v864
        %v919 = vadd.f32 %v694, %v869
        %v920 = vadd.f32 %v695, %v872
        %v921 = vadd.f32 %v696, %v877
        %v922 = vadd.f32 %v697, %v880
        %v923 = vadd.f32 %v698, %v885
        %v924 = vadd.f32 %v699, %v888
        %v925 = vadd.f32 %v700, %v893
        %v926 = vadd.f32 %v701, %v896
        %v927 = vadd.f32 %v702, %v901
        %v928 = vadd.f32 %v703, %v904
        %v929 = vadd.f32 %v704, %v909
        %v930 = vadd.f32 %v705, %v912
        %931 = vst [vmem:[#allocation2] sm:$0xff] %v915
        %932 = vst [vmem:[#allocation2 + $0x8] sm:$0xff] %v916
        %933 = vst [vmem:[#allocation2 + $0x10] sm:$0xff] %v917
        %934 = vst [vmem:[#allocation2 + $0x18] sm:$0xff] %v918
        %935 = vst [vmem:[#allocation2 + $0x20] sm:$0xff] %v919
        %936 = vst [vmem:[#allocation2 + $0x28] sm:$0xff] %v920
        %937 = vst [vmem:[#allocation2 + $0x30] sm:$0xff] %v921
        %938 = vst [vmem:[#allocation2 + $0x38] sm:$0xff] %v922
        %939 = vst [vmem:[#allocation2 + $0x40] sm:$0xff] %v923
        %940 = vst [vmem:[#allocation2 + $0x48] sm:$0xff] %v924
        %941 = vst [vmem:[#allocation2 + $0x50] sm:$0xff] %v925
        %942 = vst [vmem:[#allocation2 + $0x58] sm:$0xff] %v926
        %943 = vst [vmem:[#allocation2 + $0x60] sm:$0xff] %v927
        %944 = vst [vmem:[#allocation2 + $0x68] sm:$0xff] %v928
        %945 = vst [vmem:[#allocation2 + $0x70] sm:$0xff] %v929
        %946 = vst [vmem:[#allocation2 + $0x78] sm:$0xff] %v930
        // Predicated region
        $region61: #{tpu_custom_call.1} parent=39 // pred_check
          %p947 = pneg %p317
        $region62: #{tpu_custom_call.1} parent=39 // pred_check_branch
          %949 = sbr.rel (%p947) target = $region64
        $region63: #{tpu_custom_call.1} parent=39 // pred_region
          %v950 = vld [vmem:[#allocation2] sm:$0xff]
          %v951 = vld [vmem:[#allocation2 + $0x8] sm:$0xff]
          %v952 = vld [vmem:[#allocation2 + $0x10] sm:$0xff]
          %v953 = vld [vmem:[#allocation2 + $0x18] sm:$0xff]
          %v954 = vld [vmem:[#allocation2 + $0x20] sm:$0xff]
          %v955 = vld [vmem:[#allocation2 + $0x28] sm:$0xff]
          %v956 = vld [vmem:[#allocation2 + $0x30] sm:$0xff]
          %v957 = vld [vmem:[#allocation2 + $0x38] sm:$0xff]
          %v958 = vld [vmem:[#allocation2 + $0x40] sm:$0xff]
          %v959 = vld [vmem:[#allocation2 + $0x48] sm:$0xff]
          %v960 = vld [vmem:[#allocation2 + $0x50] sm:$0xff]
          %v961 = vld [vmem:[#allocation2 + $0x58] sm:$0xff]
          %v962 = vld [vmem:[#allocation2 + $0x60] sm:$0xff]
          %v963 = vld [vmem:[#allocation2 + $0x68] sm:$0xff]
          %v964 = vld [vmem:[#allocation2 + $0x70] sm:$0xff]
          %v965 = vld [vmem:[#allocation2 + $0x78] sm:$0xff]
          %v966 = vld [vmem:[%s3] sm:$0x1]
          %v968 = vlaneseq
          %v969 = vshrl.u32 %v968, 7
          %v970 = vsub.s32 0, %v969
          %v971 = vrot.slane %v966, %v970
          %v973 = vadd.f32 %v950, %v971
          %v974 = vadd.f32 %v951, %v971
          %v975 = vadd.f32 %v952, %v971
          %v976 = vadd.f32 %v953, %v971
          %v977 = vadd.f32 %v954, %v971
          %v978 = vadd.f32 %v955, %v971
          %v979 = vadd.f32 %v956, %v971
          %v980 = vadd.f32 %v957, %v971
          %v981 = vadd.f32 %v958, %v971
          %v982 = vadd.f32 %v959, %v971
          %v983 = vadd.f32 %v960, %v971
          %v984 = vadd.f32 %v961, %v971
          %v985 = vadd.f32 %v962, %v971
          %v986 = vadd.f32 %v963, %v971
          %v987 = vadd.f32 %v964, %v971
          %v988 = vadd.f32 %v965, %v971
          %v989 = vmax.f32 %v973, 0.0
          %v990 = vmax.f32 %v974, 0.0
          %v991 = vmax.f32 %v975, 0.0
          %v992 = vmax.f32 %v976, 0.0
          %v993 = vmax.f32 %v977, 0.0
          %v994 = vmax.f32 %v978, 0.0
          %v995 = vmax.f32 %v979, 0.0
          %v996 = vmax.f32 %v980, 0.0
          %v997 = vmax.f32 %v981, 0.0
          %v998 = vmax.f32 %v982, 0.0
          %v999 = vmax.f32 %v983, 0.0
          %v1000 = vmax.f32 %v984, 0.0
          %v1001 = vmax.f32 %v985, 0.0
          %v1002 = vmax.f32 %v986, 0.0
          %v1003 = vmax.f32 %v987, 0.0
          %v1004 = vmax.f32 %v988, 0.0
          %v1005 = vpack.c.bf16 %v990, %v989
          %v1006 = vpack.c.bf16 %v992, %v991
          %v1007 = vpack.c.bf16 %v994, %v993
          %v1008 = vpack.c.bf16 %v996, %v995
          %v1009 = vpack.c.bf16 %v998, %v997
          %v1010 = vpack.c.bf16 %v1000, %v999
          %v1011 = vpack.c.bf16 %v1002, %v1001
          %v1012 = vpack.c.bf16 %v1004, %v1003
          %v1013 = vld [vmem:[#allocation9] sm:$0xf]
          %v1014 = vld [vmem:[#allocation9 + $0x4] sm:$0xf]
          %v1015 = vld [vmem:[#allocation9 + $0x8] sm:$0xf]
          %v1016 = vld [vmem:[#allocation9 + $0xc] sm:$0xf]
          %v1017 = vld [vmem:[#allocation9 + $0x10] sm:$0xf]
          %v1018 = vld [vmem:[#allocation9 + $0x14] sm:$0xf]
          %v1019 = vld [vmem:[#allocation9 + $0x18] sm:$0xf]
          %v1020 = vld [vmem:[#allocation9 + $0x1c] sm:$0xf]
          %v1021 = vld [vmem:[#allocation9 + $0x20] sm:$0xf]
          %v1022 = vld [vmem:[#allocation9 + $0x24] sm:$0xf]
          %v1023 = vld [vmem:[#allocation9 + $0x28] sm:$0xf]
          %v1024 = vld [vmem:[#allocation9 + $0x2c] sm:$0xf]
          %v1025 = vld [vmem:[#allocation9 + $0x30] sm:$0xf]
          %v1026 = vld [vmem:[#allocation9 + $0x34] sm:$0xf]
          %v1027 = vld [vmem:[#allocation9 + $0x38] sm:$0xf]
          %v1028 = vld [vmem:[#allocation9 + $0x3c] sm:$0xf]
          %v1045 = vunpack.c.l.b16 %v1013
          %v1046 = vunpack.c.l.b16 %v1014
          %v1047 = vunpack.c.l.b16 %v1015
          %v1048 = vunpack.c.l.b16 %v1016
          %v1049 = vunpack.c.l.b16 %v1017
          %v1050 = vunpack.c.l.b16 %v1018
          %v1051 = vunpack.c.l.b16 %v1019
          %v1052 = vunpack.c.l.b16 %v1020
          %v1053 = vunpack.c.l.b16 %v1021
          %v1054 = vunpack.c.l.b16 %v1022
          %v1055 = vunpack.c.l.b16 %v1023
          %v1056 = vunpack.c.l.b16 %v1024
          %v1057 = vunpack.c.l.b16 %v1025
          %v1058 = vunpack.c.l.b16 %v1026
          %v1059 = vunpack.c.l.b16 %v1027
          %v1060 = vunpack.c.l.b16 %v1028
          %v1061 = vpack.c.b16 %v1046, %v1045
          %v1062 = vpack.c.b16 %v1048, %v1047
          %v1063 = vpack.c.b16 %v1050, %v1049
          %v1064 = vpack.c.b16 %v1052, %v1051
          %v1065 = vpack.c.b16 %v1054, %v1053
          %v1066 = vpack.c.b16 %v1056, %v1055
          %v1067 = vpack.c.b16 %v1058, %v1057
          %v1068 = vpack.c.b16 %v1060, %v1059
          %1077 = vmatprep.subr.bf16.mxu0 0
          %1078 = vmatpush1.bf16.msra.mxu0 %v1061
          %1079 = vmatprep.subr.bf16.mxu0 0
          %1080 = vmatpush1.bf16.msra.mxu0 %v1062
          %1081 = vmatprep.subr.bf16.mxu0 0
          %1082 = vmatpush1.bf16.msra.mxu0 %v1063
          %1083 = vmatprep.subr.bf16.mxu0 0
          %1084 = vmatpush1.bf16.msra.mxu0 %v1064
          %1085 = vmatprep.subr.bf16.mxu0 0
          %1086 = vmatpush1.bf16.msra.mxu0 %v1065
          %1087 = vmatprep.subr.bf16.mxu0 0
          %1088 = vmatpush1.bf16.msra.mxu0 %v1066
          %1089 = vmatprep.subr.bf16.mxu0 0
          %1090 = vmatpush1.bf16.msra.mxu0 %v1067
          %1091 = vmatprep.subr.bf16.mxu0 0
          %1092 = vmatpush1.bf16.msra.mxu0 %v1068
          %1093 = vmatprep.subr.bf16.mxu0 0
          %1094 = vmatpush1.bf16.msra.mxu0 0
          %1095 = vmatprep.subr.bf16.mxu0 0
          %1096 = vmatpush1.bf16.msra.mxu0 0
          %1097 = vmatprep.subr.bf16.mxu0 0
          %1098 = vmatpush1.bf16.msra.mxu0 0
          %1099 = vmatprep.subr.bf16.mxu0 0
          %1100 = vmatpush1.bf16.msra.mxu0 0
          %1101 = vmatprep.subr.bf16.mxu0 0
          %1102 = vmatpush1.bf16.msra.mxu0 0
          %1103 = vmatprep.subr.bf16.mxu0 0
          %1104 = vmatpush1.bf16.msra.mxu0 0
          %1105 = vmatprep.subr.bf16.mxu0 0
          %1106 = vmatpush1.bf16.msra.mxu0 0
          %1107 = vmatprep.subr.bf16.mxu0 0
          %1108 = vmatpush1.bf16.msra.mxu0 0
          %1109 = vmatprep.mubr.bf16.mxu0 0
          %1110 = vmatmul.mubr.bf16.gmra.mrb[0].mxu0 %v1005
          %v1111 = vpop.f32.mrb[0].mxu0
          %v1112 = vadd.f32 0.0, %v1111
          %v1113 = vpop.f32.mrb[0].mxu0
          %v1114 = vpop.f32.mrb[0].mxu0
          %v1115 = vadd.f32 0.0, %v1114
          %v1116 = vpop.f32.mrb[0].mxu0
          %1117 = vmatprep.mubr.bf16.mxu0 0
          %1118 = vmatmul.mubr.bf16.gmra.mrb[0].mxu0 %v1006
          %v1119 = vpop.f32.mrb[0].mxu0
          %v1120 = vadd.f32 0.0, %v1119
          %v1121 = vpop.f32.mrb[0].mxu0
          %v1122 = vpop.f32.mrb[0].mxu0
          %v1123 = vadd.f32 0.0, %v1122
          %v1124 = vpop.f32.mrb[0].mxu0
          %1125 = vmatprep.mubr.bf16.mxu0 0
          %1126 = vmatmul.mubr.bf16.gmra.mrb[0].mxu0 %v1007
          %v1127 = vpop.f32.mrb[0].mxu0
          %v1128 = vadd.f32 0.0, %v1127
          %v1129 = vpop.f32.mrb[0].mxu0
          %v1130 = vpop.f32.mrb[0].mxu0
          %v1131 = vadd.f32 0.0, %v1130
          %v1132 = vpop.f32.mrb[0].mxu0
          %1133 = vmatprep.mubr.bf16.mxu0 0
          %1134 = vmatmul.mubr.bf16.gmra.mrb[0].mxu0 %v1008
          %v1135 = vpop.f32.mrb[0].mxu0
          %v1136 = vadd.f32 0.0, %v1135
          %v1137 = vpop.f32.mrb[0].mxu0
          %v1138 = vpop.f32.mrb[0].mxu0
          %v1139 = vadd.f32 0.0, %v1138
          %v1140 = vpop.f32.mrb[0].mxu0
          %1141 = vmatprep.mubr.bf16.mxu0 0
          %1142 = vmatmul.mubr.bf16.gmra.mrb[0].mxu0 %v1009
          %v1143 = vpop.f32.mrb[0].mxu0
          %v1144 = vadd.f32 0.0, %v1143
          %v1145 = vpop.f32.mrb[0].mxu0
          %v1146 = vpop.f32.mrb[0].mxu0
          %v1147 = vadd.f32 0.0, %v1146
          %v1148 = vpop.f32.mrb[0].mxu0
          %1149 = vmatprep.mubr.bf16.mxu0 0
          %1150 = vmatmul.mubr.bf16.gmra.mrb[0].mxu0 %v1010
          %v1151 = vpop.f32.mrb[0].mxu0
          %v1152 = vadd.f32 0.0, %v1151
          %v1153 = vpop.f32.mrb[0].mxu0
          %v1154 = vpop.f32.mrb[0].mxu0
          %v1155 = vadd.f32 0.0, %v1154
          %v1156 = vpop.f32.mrb[0].mxu0
          %1157 = vmatprep.mubr.bf16.mxu0 0
          %1158 = vmatmul.mubr.bf16.gmra.mrb[0].mxu0 %v1011
          %v1159 = vpop.f32.mrb[0].mxu0
          %v1160 = vadd.f32 0.0, %v1159
          %v1161 = vpop.f32.mrb[0].mxu0
          %v1162 = vpop.f32.mrb[0].mxu0
          %v1163 = vadd.f32 0.0, %v1162
          %v1164 = vpop.f32.mrb[0].mxu0
          %1165 = vmatprep.mubr.bf16.mxu0 0
          %1166 = vmatmul.mubr.bf16.gmra.mrb[0].mxu0 %v1012
          %v1167 = vpop.f32.mrb[0].mxu0
          %v1168 = vadd.f32 0.0, %v1167
          %v1169 = vpop.f32.mrb[0].mxu0
          %v1170 = vpop.f32.mrb[0].mxu0
          %v1171 = vadd.f32 0.0, %v1170
          %v1172 = vpop.f32.mrb[0].mxu0
          %1173 = vdwg.mxu0
          %v1174 = vpack.c.bf16 %v1115, %v1112
          %v1175 = vpack.c.bf16 %v1123, %v1120
          %v1176 = vpack.c.bf16 %v1131, %v1128
          %v1177 = vpack.c.bf16 %v1139, %v1136
          %v1178 = vpack.c.bf16 %v1147, %v1144
          %v1179 = vpack.c.bf16 %v1155, %v1152
          %v1180 = vpack.c.bf16 %v1163, %v1160
          %v1181 = vpack.c.bf16 %v1171, %v1168
          %v1190 = vunpack.c.l.b16 %v1174
          %v1191 = vunpack.c.h.b16 %v1174
          %v1192 = vunpack.c.l.b16 %v1175
          %v1193 = vunpack.c.h.b16 %v1175
          %v1194 = vunpack.c.l.b16 %v1176
          %v1195 = vunpack.c.h.b16 %v1176
          %v1196 = vunpack.c.l.b16 %v1177
          %v1197 = vunpack.c.h.b16 %v1177
          %v1198 = vunpack.c.l.b16 %v1178
          %v1199 = vunpack.c.h.b16 %v1178
          %v1200 = vunpack.c.l.b16 %v1179
          %v1201 = vunpack.c.h.b16 %v1179
          %v1202 = vunpack.c.l.b16 %v1180
          %v1203 = vunpack.c.h.b16 %v1180
          %v1204 = vunpack.c.l.b16 %v1181
          %v1205 = vunpack.c.h.b16 %v1181
          %v1206 = vpack.c.b16 %v1190, %v1190
          %v1207 = vpack.c.b16 %v1191, %v1191
          %v1208 = vpack.c.b16 %v1192, %v1192
          %v1209 = vpack.c.b16 %v1193, %v1193
          %v1210 = vpack.c.b16 %v1194, %v1194
          %v1211 = vpack.c.b16 %v1195, %v1195
          %v1212 = vpack.c.b16 %v1196, %v1196
          %v1213 = vpack.c.b16 %v1197, %v1197
          %v1214 = vpack.c.b16 %v1198, %v1198
          %v1215 = vpack.c.b16 %v1199, %v1199
          %v1216 = vpack.c.b16 %v1200, %v1200
          %v1217 = vpack.c.b16 %v1201, %v1201
          %v1218 = vpack.c.b16 %v1202, %v1202
          %v1219 = vpack.c.b16 %v1203, %v1203
          %v1220 = vpack.c.b16 %v1204, %v1204
          %v1221 = vpack.c.b16 %v1205, %v1205
          %1238 = vst [vmem:[%s311] sm:$0xf] %v1206
          %1239 = vst [vmem:[%s311 + $0x4] sm:$0xf] %v1207
          %1240 = vst [vmem:[%s311 + $0x8] sm:$0xf] %v1208
          %1241 = vst [vmem:[%s311 + $0xc] sm:$0xf] %v1209
          %1242 = vst [vmem:[%s311 + $0x10] sm:$0xf] %v1210
          %1243 = vst [vmem:[%s311 + $0x14] sm:$0xf] %v1211
          %1244 = vst [vmem:[%s311 + $0x18] sm:$0xf] %v1212
          %1245 = vst [vmem:[%s311 + $0x1c] sm:$0xf] %v1213
          %1246 = vst [vmem:[%s311 + $0x20] sm:$0xf] %v1214
          %1247 = vst [vmem:[%s311 + $0x24] sm:$0xf] %v1215
          %1248 = vst [vmem:[%s311 + $0x28] sm:$0xf] %v1216
          %1249 = vst [vmem:[%s311 + $0x2c] sm:$0xf] %v1217
          %1250 = vst [vmem:[%s311 + $0x30] sm:$0xf] %v1218
          %1251 = vst [vmem:[%s311 + $0x34] sm:$0xf] %v1219
          %1252 = vst [vmem:[%s311 + $0x38] sm:$0xf] %v1220
          %1253 = vst [vmem:[%s311 + $0x3c] sm:$0xf] %v1221
        $region64: #{tpu_custom_call.1} parent=39 // pred_fallthru
          _
        %s1254 = sand.u32 %s161, 1
        %s1255 = scalar_lea.sflag [#allocation5], %s1254
        %s1256 = sand.u32 %s161, 1
        %s1257 = smul.addr %s1256, 64
        %s1258 = scalar_lea.vmem [#allocation11], %s1257
        // Predicated region
        $region65: #{tpu_custom_call.1} parent=39 // pred_check
          %p1259 = pneg %p171
        $region66: #{tpu_custom_call.1} parent=39 // pred_check_branch
          %1261 = sbr.rel (%p1259) target = $region68
        $region67: #{tpu_custom_call.1} parent=39 // pred_region
          %s1262 = smul.u32 16, %s28
          %s1264 = ssub.s32 1024, 1024
          %1265 = vsyncadd %s1255, %s1264
          %s1266 = smul.addr %s1262, 64
          %s1267 = scalar_lea.hbm %s5, %s1266
          %s1268 = sshll.u32 %s1258, 4
          %s1269 = int_to_ptr.vmem [resolvable:$true] %s1268
          %1274 = dma.vmem_to_hbm [thread:$0]  %s1269, 1024, %s1267, %s1255, 64, 64, 4
        $region68: #{tpu_custom_call.1} parent=39 // pred_fallthru
          _
      $region40: #{tpu_custom_call.1} parent=5 // pred_fallthru
        _
      %p1275 = scmp.le.s32.totalorder 2, %s19
      // Predicated region
      $region69: #{tpu_custom_call.1} parent=5 // pred_check
        %p1276 = pneg %p1275
      $region70: #{tpu_custom_call.1} parent=5 // pred_check_branch
        %1278 = sbr.rel (%p1276) target = $region72
      $region71: #{tpu_custom_call.1} parent=5 // pred_region
        %s1279 = ssub.s32 %s19, 2
        // Predicated region
        $region73: #{tpu_custom_call.1} parent=71 // pred_check
          %p1280 = pneg %p177
        $region74: #{tpu_custom_call.1} parent=71 // pred_check_branch
          %1282 = sbr.rel (%p1280) target = $region76
        $region75: #{tpu_custom_call.1} parent=71 // pred_region
          %s1283 = sand.u32 %s162, 1
          %s1284 = scalar_lea.sflag [#allocation5], %s1283
          %s1285 = sand.u32 %s162, 1
          %s1286 = smul.addr %s1285, 64
          %s1287 = scalar_lea.vmem [#allocation11], %s1286
          %1288 = dma.done %s1284, 1024
        $region76: #{tpu_custom_call.1} parent=71 // pred_fallthru
          _
      $region72: #{tpu_custom_call.1} parent=5 // pred_fallthru
        _
    $region6: #{tpu_custom_call.1} parent=1 // loop_footer
      %s23 = sadd.s32 1, %s19
    $region7: #{tpu_custom_call.1} parent=1 // loop_footer_branch
      %18 = sbr.rel target = $region3
    $region8: #{tpu_custom_call.1} parent=1 // loop_exit
      _
    %1289 = vsyncpa [#allocation4], 1
    %s1290 = scalar_lea.sflag [#allocation4], 1
    %1291 = vsyncpa %s1290, 1
    %1292 = vsyncpa [#allocation7], 1
    %1293 = vsyncpa [#allocation10], 1
    %1294 = vsyncpa [#allocation5], 1
    %s1295 = scalar_lea.sflag [#allocation5], 1
    %1296 = vsyncpa %s1295, 1

</llo_original>
